<compile_context>
chip_gen: v7x
topology: tpu7x:2x2x1
jax: 0.10.0
libtpu: 0.0.40
codegen_flags: <defaults>
</compile_context>

<pallas_src>
import functools

import jax
import jax.numpy as jnp
from jax.experimental import pallas as pl
from jax.experimental.pallas import tpu as pltpu


def _round_up(x, m):
    return ((x + m - 1) // m) * m


def _vmem_capacity_bytes():
    try:
        return int(pltpu.get_tpu_info().vmem_capacity_bytes)
    except Exception:
        return 64 * 1024 * 1024          # conservative default (v7x-sized VMEM)


def _efocal_tile_kernel(x_ref, t_ref, alpha_ref, out_ref, *, gamma, n_rows):
    """One grid step: partial focal-loss sum over a (tile_n, C) logits tile."""
    tile_n, c = x_ref.shape
    x = x_ref[...].astype(jnp.float32)           # (tile_n, C) logits
    alpha = alpha_ref[...].astype(jnp.float32)   # (1, C) per-class alpha
    t_row = t_ref[...]                           # (1, tile_n) int32, lane-dense
    t_col = jnp.transpose(t_row, (1, 0))         # (tile_n, 1): lane->sublane (XLU)

    # One-hot target mask via iota compare (replaces torch scatter_).
    col = jax.lax.broadcasted_iota(jnp.int32, (tile_n, c), 1)
    mask = col == t_col                          # (tile_n, C)

    # Log-sum-exp gather; the only O(tile_n*C) transcendental is this exp.
    m = jnp.max(x, axis=1, keepdims=True)                              # (tile_n,1)
    e = jnp.exp(x - m)                                                 # (tile_n,C)
    sum_e = jnp.sum(e, axis=1, keepdims=True)                          # (tile_n,1)
    e_t = jnp.sum(jnp.where(mask, e, 0.0), axis=1, keepdims=True)      # exp(x_t-m)
    x_t = jnp.sum(jnp.where(mask, x, 0.0), axis=1, keepdims=True)      # x[target]
    # NOTE: out-of-range targets give an all-false mask -> that row silently
    # contributes 0 loss (the torch scatter_/gather would raise instead).
    a_t = jnp.sum(jnp.where(mask, alpha, 0.0), axis=1, keepdims=True)  # alpha[t]

    log_p = (x_t - m) - jnp.log(sum_e)           # log softmax(x)[target] (stable)
    p = e_t / sum_e                              # softmax(x)[target] (reuses e)
    row_loss = -a_t * jnp.exp(-gamma * p) * log_p

    # Mask rows beyond N (partial last tile / wrapper padding); where() is a
    # select, so NaNs in the undefined padding rows cannot leak into the sum.
    rid = pl.program_id(0) * tile_n + jax.lax.broadcasted_iota(
        jnp.int32, (tile_n, 1), 0)
    row_loss = jnp.where(rid < n_rows, row_loss, 0.0)

    out_ref[...] = jnp.sum(row_loss, axis=0, keepdims=True)   # (1, 1) partial


def efocal_loss(inputs, targets, alpha, *, gamma=2.0, size_average=True,
                tile_n=None):
    """inputs: (N, C) float logits; targets: (N,) int; alpha: (C,) or (C, 1)."""
    n, c = inputs.shape
    if not jnp.issubdtype(inputs.dtype, jnp.floating):
        inputs = inputs.astype(jnp.float32)       # keep bf16/f32 as given
    itemsize = jnp.dtype(inputs.dtype).itemsize
    align = 16 if itemsize <= 2 else 8            # bf16 packs 2 rows / sublane

    vmem_cap = _vmem_capacity_bytes()
    big_vmem = vmem_cap >= 96 * 1024 * 1024       # v5e / v6e (128 MiB VMEM)
    vmem_limit = (64 if big_vmem else 48) * 1024 * 1024

    if tile_n is None:
        # Per-buffer VMEM footprint of one grid step: the logits tile (lanes
        # padded to a multiple of 128) plus the 8-sublane-padded targets row.
        c_pad = _round_up(c, 128)
        per_row_bytes = c_pad * itemsize + 8 * 4
        budget = (16 if big_vmem else 8) * 1024 * 1024   # per double-buffer
        tile_n = min(budget // per_row_bytes, 8192)
    # Keep >= 2 grid steps (>= 4 for large N): v7x megacore + pipeline overlap.
    if n >= 2 * align:
        steps = 4 if n >= 4 * 512 else 2
        tile_n = min(int(tile_n), _round_up(pl.cdiv(n, steps), align))
    tile_n = max(align, min(int(tile_n), _round_up(n, align)))
    tile_n = _round_up(tile_n, align)
    num_tiles = pl.cdiv(n, tile_n)
    n_pad = num_tiles * tile_n

    # Lane-dense targets: (num_tiles, 1, tile_n).  The leading dim is squeezed
    # in the kernel, so the block's last two dims equal the array's (1, tile_n).
    t_lane = jnp.pad(targets.astype(jnp.int32).reshape(-1), (0, n_pad - n))
    t_lane = t_lane.reshape(num_tiles, 1, tile_n)
    alpha2d = alpha.reshape(1, c).astype(jnp.float32)

    kernel = functools.partial(_efocal_tile_kernel, gamma=float(gamma), n_rows=n)

    cost = pl.CostEstimate(
        flops=8 * n * c,
        transcendentals=n * c + 3 * n,
        bytes_accessed=n * c * itemsize + n_pad * 4 + c * 4 + num_tiles * 4,
    )

    partial = pl.pallas_call(
        kernel,
        out_shape=jax.ShapeDtypeStruct((num_tiles, 1, 1), jnp.float32),
        grid=(num_tiles,),
        in_specs=[
            pl.BlockSpec((tile_n, c), lambda i: (i, 0)),            # logits tile
            pl.BlockSpec((None, 1, tile_n), lambda i: (i, 0, 0)),   # targets row
            pl.BlockSpec((1, c), lambda i: (0, 0)),                 # alpha (const)
        ],
        out_specs=pl.BlockSpec((None, 1, 1), lambda i: (i, 0, 0)),  # partial sum
        compiler_params=pltpu.CompilerParams(
            dimension_semantics=("parallel",),
            vmem_limit_bytes=vmem_limit,
        ),
        cost_estimate=cost,
    )(inputs, t_lane, alpha2d)

    total = jnp.sum(partial)                      # num_tiles floats — negligible
    return total / n if size_average else total


def efocal_loss_ref(inputs, targets, alpha, *, gamma=2.0, size_average=True):
    p = jax.nn.softmax(inputs.astype(jnp.float32), axis=1)
    probs = jnp.take_along_axis(p, targets.reshape(-1, 1), axis=1)
    a = alpha.reshape(-1)[targets].reshape(-1, 1)
    batch_loss = -a * jnp.exp(-gamma * probs) * jnp.log(probs)
    return jnp.mean(batch_loss) if size_average else jnp.sum(batch_loss)


if __name__ == "__main__":
    key = jax.random.PRNGKey(0)
    k1, k2, k3, k4 = jax.random.split(key, 4)

    # Small shape consistent with the module (N rows of C-class logits).
    N, C = 8, 16
    x = jax.random.normal(k1, (N, C), dtype=jnp.float32)
    t = jax.random.randint(k2, (N,), 0, C, dtype=jnp.int32)
    alpha = jnp.linspace(0.5, 1.5, C).astype(jnp.float32)

    loss = jax.block_until_ready(
        efocal_loss(x, t, alpha, gamma=2.0, size_average=True))
    ref = efocal_loss_ref(x, t, alpha, gamma=2.0, size_average=True)
    assert jnp.allclose(loss, ref, rtol=1e-4, atol=1e-5), (loss, ref)

    # Larger, non-multiple-of-tile shape: multi-step grid, partial last tile,
    # in-kernel masked reduction.
    N2, C2 = 300, 128
    x2 = jax.random.normal(k3, (N2, C2), dtype=jnp.float32)
    t2 = jax.random.randint(k4, (N2,), 0, C2, dtype=jnp.int32)
    a2 = jnp.linspace(0.75, 1.25, C2).astype(jnp.float32)
    loss2 = jax.block_until_ready(
        efocal_loss(x2, t2, a2, gamma=2.0, size_average=False))
    ref2 = efocal_loss_ref(x2, t2, a2, gamma=2.0, size_average=False)
    assert jnp.allclose(loss2, ref2, rtol=1e-4, atol=1e-3), (loss2, ref2)

    # bf16 logits path (halved HBM bytes, 16-row sublane alignment).
    x2b = x2.astype(jnp.bfloat16)
    loss_b = jax.block_until_ready(
        efocal_loss(x2b, t2, a2, gamma=2.0, size_average=False))
    ref_b = efocal_loss_ref(x2b.astype(jnp.float32), t2, a2,
                            gamma=2.0, size_average=False)
    assert jnp.allclose(loss_b, ref_b, rtol=1e-3, atol=1e-2), (loss_b, ref_b)

    print("KERNEL_OK")
</pallas_src>

<mosaic_0001>
module attributes {stable_mosaic.version = 11 : i64} {
  func.func @_efocal_tile_kernel(%arg0: i32, %arg1: memref<8x16xf32, #tpu.memory_space<vmem>>, %arg2: memref<1x1x8xi32, #tpu.memory_space<vmem>>, %arg3: memref<1x16xf32, #tpu.memory_space<vmem>>, %arg4: memref<1x1x1xf32, #tpu.memory_space<vmem>>) attributes {dimension_semantics = [#tpu.dimension_semantics<parallel>], iteration_bounds = array<i64: 1>, scalar_prefetch = 0 : i64, scratch_operands = 0 : i64, tpu.core_type = #tpu.core_type<tc>, window_params = [{transform_indices = @transform_0, window_bounds = array<i64: 8, 16>}, {transform_indices = @transform_1, window_bounds = array<i64: 1, 1, 8>}, {pipeline_mode = #tpu.pipeline_mode<synchronous>, transform_indices = @transform_2, window_bounds = array<i64: 1, 16>}, {transform_indices = @transform_3, window_bounds = array<i64: 1, 1, 1>}]} {
    %c0 = arith.constant 0 : index
    %c0_0 = arith.constant 0 : index
    %0 = vector.load %arg1[%c0, %c0_0] : memref<8x16xf32, #tpu.memory_space<vmem>>, vector<8x16xf32>
    %c0_1 = arith.constant 0 : index
    %c0_2 = arith.constant 0 : index
    %1 = vector.load %arg3[%c0_1, %c0_2] : memref<1x16xf32, #tpu.memory_space<vmem>>, vector<1x16xf32>
    %c0_3 = arith.constant 0 : index
    %c0_4 = arith.constant 0 : index
    %c0_5 = arith.constant 0 : index
    %2 = vector.load %arg2[%c0_3, %c0_4, %c0_5] : memref<1x1x8xi32, #tpu.memory_space<vmem>>, vector<1x1x8xi32>
    %3 = vector.shape_cast %2 : vector<1x1x8xi32> to vector<1x8xi32>
    %4 = tpu.transpose %3, [1, 0] : vector<1x8xi32> -> vector<8x1xi32>
    %5 = tpu.iota {dimensions = array<i32: 1>} : vector<8x16xi32>
    %6 = vector.broadcast %4 : vector<8x1xi32> to vector<8x16xi32>
    %7 = arith.cmpi eq, %5, %6 : vector<8x16xi32>
    %cst = arith.constant dense<0xFF800000> : vector<8xf32>
    %8 = vector.multi_reduction <maximumf>, %0, %cst [1] : vector<8x16xf32> to vector<8xf32>
    %9 = vector.shape_cast %8 : vector<8xf32> to vector<8x1xf32>
    %10 = vector.broadcast %9 : vector<8x1xf32> to vector<8x16xf32>
    %11 = arith.subf %0, %10 : vector<8x16xf32>
    %12 = math.exp %11 : vector<8x16xf32>
    %cst_6 = arith.constant dense<0.000000e+00> : vector<8xf32>
    %13 = vector.multi_reduction <add>, %12, %cst_6 [1] : vector<8x16xf32> to vector<8xf32>
    %14 = vector.shape_cast %13 : vector<8xf32> to vector<8x1xf32>
    %cst_7 = arith.constant 0.000000e+00 : f32
    %15 = vector.broadcast %cst_7 : f32 to vector<8x16xf32>
    %16 = arith.select %7, %12, %15 : vector<8x16xi1>, vector<8x16xf32>
    %cst_8 = arith.constant dense<0.000000e+00> : vector<8xf32>
    %17 = vector.multi_reduction <add>, %16, %cst_8 [1] : vector<8x16xf32> to vector<8xf32>
    %18 = vector.shape_cast %17 : vector<8xf32> to vector<8x1xf32>
    %cst_9 = arith.constant 0.000000e+00 : f32
    %19 = vector.broadcast %cst_9 : f32 to vector<8x16xf32>
    %20 = arith.select %7, %0, %19 : vector<8x16xi1>, vector<8x16xf32>
    %cst_10 = arith.constant dense<0.000000e+00> : vector<8xf32>
    %21 = vector.multi_reduction <add>, %20, %cst_10 [1] : vector<8x16xf32> to vector<8xf32>
    %22 = vector.shape_cast %21 : vector<8xf32> to vector<8x1xf32>
    %cst_11 = arith.constant 0.000000e+00 : f32
    %23 = vector.shape_cast %1 : vector<1x16xf32> to vector<1x16xf32>
    %24 = vector.broadcast %23 : vector<1x16xf32> to vector<8x16xf32>
    %25 = vector.broadcast %cst_11 : f32 to vector<8x16xf32>
    %26 = arith.select %7, %24, %25 : vector<8x16xi1>, vector<8x16xf32>
    %cst_12 = arith.constant dense<0.000000e+00> : vector<8xf32>
    %27 = vector.multi_reduction <add>, %26, %cst_12 [1] : vector<8x16xf32> to vector<8xf32>
    %28 = vector.shape_cast %27 : vector<8xf32> to vector<8x1xf32>
    %29 = arith.subf %22, %9 : vector<8x1xf32>
    %30 = math.log %14 : vector<8x1xf32>
    %31 = arith.subf %29, %30 : vector<8x1xf32>
    %32 = arith.divf %18, %14 : vector<8x1xf32>
    %cst_13 = arith.constant 0.000000e+00 : f32
    %33 = vector.broadcast %cst_13 : f32 to vector<8x1xf32>
    %34 = arith.subf %33, %28 : vector<8x1xf32>
    %cst_14 = arith.constant -2.000000e+00 : f32
    %35 = vector.broadcast %cst_14 : f32 to vector<8x1xf32>
    %36 = arith.mulf %35, %32 : vector<8x1xf32>
    %37 = math.exp %36 : vector<8x1xf32>
    %38 = arith.mulf %34, %37 : vector<8x1xf32>
    %39 = arith.mulf %38, %31 : vector<8x1xf32>
    %c8_i32 = arith.constant 8 : i32
    %40 = arith.muli %arg0, %c8_i32 : i32
    %41 = tpu.iota {dimensions = array<i32: 0>} : vector<8x1xi32>
    %42 = vector.broadcast %40 : i32 to vector<8x1xi32>
    %43 = arith.addi %42, %41 : vector<8x1xi32>
    %c8_i32_15 = arith.constant 8 : i32
    %44 = vector.broadcast %c8_i32_15 : i32 to vector<8x1xi32>
    %45 = arith.cmpi slt, %43, %44 : vector<8x1xi32>
    %cst_16 = arith.constant 0.000000e+00 : f32
    %46 = vector.broadcast %cst_16 : f32 to vector<8x1xf32>
    %47 = arith.select %45, %39, %46 : vector<8x1xi1>, vector<8x1xf32>
    %cst_17 = arith.constant dense<0.000000e+00> : vector<1xf32>
    %48 = vector.multi_reduction <add>, %47, %cst_17 [0] : vector<8x1xf32> to vector<1xf32>
    %49 = vector.shape_cast %48 : vector<1xf32> to vector<1x1xf32>
    %c0_18 = arith.constant 0 : index
    %c0_19 = arith.constant 0 : index
    %c0_20 = arith.constant 0 : index
    %50 = vector.load %arg4[%c0_18, %c0_19, %c0_20] : memref<1x1x1xf32, #tpu.memory_space<vmem>>, vector<1x1x1xf32>
    %51 = vector.shape_cast %50 : vector<1x1x1xf32> to vector<1x1xf32>
    %52 = vector.shape_cast %49 : vector<1x1xf32> to vector<1x1x1xf32>
    tpu.vector_store %arg4[%c0_18, %c0_19, %c0_20], %52 {strides = array<i32>} : memref<1x1x1xf32, #tpu.memory_space<vmem>>, vector<1x1x1xf32>,
    return
  }
  func.func @transform_0(%arg0: i32) -> (i32, i32) {
    %c0_i32 = arith.constant 0 : i32
    %c0_i32_0 = arith.constant 0 : i32
    return %arg0, %c0_i32 : i32, i32
  }
  func.func @transform_1(%arg0: i32) -> (i32, i32, i32) {
    %c0_i32 = arith.constant 0 : i32
    %c0_i32_0 = arith.constant 0 : i32
    %c0_i32_1 = arith.constant 0 : i32
    return %arg0, %c0_i32, %c0_i32_0 : i32, i32, i32
  }
  func.func @transform_2(%arg0: i32) -> (i32, i32) {
    %c0_i32 = arith.constant 0 : i32
    %c0_i32_0 = arith.constant 0 : i32
    %c0_i32_1 = arith.constant 0 : i32
    return %c0_i32, %c0_i32_0 : i32, i32
  }
  func.func @transform_3(%arg0: i32) -> (i32, i32, i32) {
    %c0_i32 = arith.constant 0 : i32
    %c0_i32_0 = arith.constant 0 : i32
    %c0_i32_1 = arith.constant 0 : i32
    return %arg0, %c0_i32, %c0_i32_0 : i32, i32, i32
  }
}

</mosaic_0001>

<llo_original>
// kernel: tpu_custom_call.1
$region0: #{tpu_custom_call.1}
  #allocation0 [shape = 'u32[]', space=smem, size = 0x4, offset = 0x4, fixed_abs, tag = 'smem constant byte address 0x4 - core index']
  #allocation1 [shape = 'u32[144,128]{1,0:T(1,128)}', space=vmem, size = 0x12000, scoped, tag = 'internal scratch']
  %s0 = inlined_call_operand.hbm [shape: f32[8,16], index: 0, kind: input, shape index: {}]
  %s1 = inlined_call_operand.vmem [shape: s32[1,1,8], index: 1, kind: input, shape index: {}]
  %s2 = inlined_call_operand.vmem [shape: f32[1,16], index: 2, kind: input, shape index: {}]
  %s3 = inlined_call_operand.hbm [shape: f32[1,1,1], index: 3, kind: output, shape index: {}]
  %s4 = sld [smem:[#allocation0]]
  $region26: #{tpu_custom_call.1} parent=0
    _
  %s6 = ssub.s32 1, %s4
  %s7 = scalar_select 0, %s6, %s4
  $region1: #{tpu_custom_call.1} parent=0
    #allocation2 [shape = 'u8[4096]{0}', space=vmem, size = 0x1000, scoped, tag = 'input window, operand 0, single buffered']
    #allocation3 [shape = 's32[1]{0}', space=sflag, size = 0x4, scoped, tag = 'scoped memory for tpu_custom_call.1']
    #allocation4 [shape = 's32[1]{0}', space=sflag, size = 0x4, scoped, tag = 'scoped memory for tpu_custom_call.1']
    #allocation5 [shape = 'u8[512]{0}', space=vmem, size = 0x400, scoped, tag = 'output window, operand 0, single buffered']
    %8 = vsyncpa [#allocation3], 0
    %9 = vsyncpa [#allocation4], 0
    // Predicated region
    $region2: #{tpu_custom_call.1} parent=1 // pred_check
      _
    $region3: #{tpu_custom_call.1} parent=1 // pred_check_branch
      %11 = sbr.rel (0) target = $region5
    $region4: #{tpu_custom_call.1} parent=1 // pred_region
      %s13 = ssub.s32 128, 128
      %14 = vsyncadd [#allocation3], %s13
      %s16 = sshll.u32 [#allocation2], 4
      %s17 = int_to_ptr.vmem [resolvable:$true] %s16
      %19 = dma.hbm_to_vmem [thread:$0]  %s0, 128, %s17, [#allocation3]
    $region5: #{tpu_custom_call.1} parent=1 // pred_fallthru
      _
    // Predicated region
    $region6: #{tpu_custom_call.1} parent=1 // pred_check
      _
    $region7: #{tpu_custom_call.1} parent=1 // pred_check_branch
      %21 = sbr.rel (0) target = $region9
    $region8: #{tpu_custom_call.1} parent=1 // pred_region
      _
    $region9: #{tpu_custom_call.1} parent=1 // pred_fallthru
      _
    // Predicated region
    $region10: #{tpu_custom_call.1} parent=1 // pred_check
      _
    $region11: #{tpu_custom_call.1} parent=1 // pred_check_branch
      %23 = sbr.rel (0) target = $region13
    $region12: #{tpu_custom_call.1} parent=1 // pred_region
      _
    $region13: #{tpu_custom_call.1} parent=1 // pred_fallthru
      _
    // Predicated region
    $region14: #{tpu_custom_call.1} parent=1 // pred_check
      _
    $region15: #{tpu_custom_call.1} parent=1 // pred_check_branch
      %25 = sbr.rel (0) target = $region17
    $region16: #{tpu_custom_call.1} parent=1 // pred_region
      %26 = dma.done [#allocation3], 128
    $region17: #{tpu_custom_call.1} parent=1 // pred_fallthru
      _
    %v27 = vld [vmem:[#allocation2] sm:$0xff]
    %v28 = vld [vmem:[%s2] sm:$0x1]
    %v29 = vld [vmem:[%s1] sm:$0x1]
    %30 = vxpose.xlu0.b32.start [1/16] %v29, 128
    %31 = vxpose.xlu0.b32.cont [2/16] 0, 128
    %32 = vxpose.xlu0.b32.cont [3/16] 0, 128
    %33 = vxpose.xlu0.b32.cont [4/16] 0, 128
    %34 = vxpose.xlu0.b32.cont [5/16] 0, 128
    %35 = vxpose.xlu0.b32.cont [6/16] 0, 128
    %36 = vxpose.xlu0.b32.cont [7/16] 0, 128
    %37 = vxpose.xlu0.b32.cont [8/16] 0, 128
    %38 = vxpose.xlu0.b32.cont [9/16] 0, 128
    %39 = vxpose.xlu0.b32.cont [10/16] 0, 128
    %40 = vxpose.xlu0.b32.cont [11/16] 0, 128
    %41 = vxpose.xlu0.b32.cont [12/16] 0, 128
    %42 = vxpose.xlu0.b32.cont [13/16] 0, 128
    %43 = vxpose.xlu0.b32.cont [14/16] 0, 128
    %44 = vxpose.xlu0.b32.cont [15/16] 0, 128
    %45 = vxpose.xlu0.b32.end [16/16] 0, 128
    %v46 = vpop.trf.xlu0
    %v47 = vpop.trf.xlu0
    %v48 = vpop.trf.xlu0
    %v49 = vpop.trf.xlu0
    %v50 = vpop.trf.xlu0
    %v51 = vpop.trf.xlu0
    %v52 = vpop.trf.xlu0
    %v53 = vpop.trf.xlu0
    %v54 = vpop.trf.xlu0
    %v55 = vpop.trf.xlu0
    %v56 = vpop.trf.xlu0
    %v57 = vpop.trf.xlu0
    %v58 = vpop.trf.xlu0
    %v59 = vpop.trf.xlu0
    %v60 = vpop.trf.xlu0
    %v61 = vpop.trf.xlu0
    %v62 = vlaneseq
    %v63 = vand.u32 %v62, 127
    %64 = vset.pattern.permute.xlu0 0
    %65 = vperm.xlu0 %64, %v46
    %v66 = vpop.permute.xlu0 %65
    %vm67 = vcmp.eq.s32.totalorder %v63, %v66
    %vm68 = vcmask 130048
    %v69 = vsel %vm68, %v27, -inf
    %70 = vmax.xlane.f32.xlu0 %v69
    %v71 = vpop.xlane.xlu0 %70
    %v72 = vsub.f32 %v27, %v71
    %v73 = vmul.f32 %v72, 1.442695
    %v74 = vpow.pop %v73
    %v75 = vsel %vm68, %v74, 0.0
    %76 = vadd.xlane.f32.xlu0 %v75
    %v77 = vpop.xlane.xlu0 %76
    %v78 = vsel %vm67, %v74, 0.0
    %v79 = vsel %vm68, %v78, 0.0
    %80 = vadd.xlane.f32.xlu0 %v79
    %v81 = vpop.xlane.xlu0 %80
    %v82 = vsel %vm67, %v27, 0.0
    %v83 = vsel %vm68, %v82, 0.0
    %84 = vadd.xlane.f32.xlu0 %v83
    %v85 = vpop.xlane.xlu0 %84
    %v87 = vlaneseq
    %v88 = vshrl.u32 %v87, 7
    %v89 = vsub.s32 0, %v88
    %v90 = vrot.slane %v28, %v89
    %v92 = vsel %vm67, %v90, 0.0
    %v93 = vsel %vm68, %v92, 0.0
    %94 = vadd.xlane.f32.xlu0 %v93
    %v95 = vpop.xlane.xlu0 %94
    %v96 = vsub.f32 %v85, %v71
    %v97 = vlog2.pop %v77
    %v98 = vmul.f32 %v97, 0.6931472
    %v99 = vsub.f32 %v96, %v98
    %v100 = vrcp.pop %v77
    %v101 = vmul.f32 %v81, %v100
    %v102 = vsub.f32 0.0, %v95
    %v103 = vmul.f32 %v101, -2.0
    %v104 = vmul.f32 %v103, 1.442695
    %v105 = vpow.pop %v104
    %v106 = vmul.f32 %v102, %v105
    %v107 = vmul.f32 %v106, %v99
    %s108 = smul.u32 0, 8
    %v109 = vlaneseq
    %v110 = vshrl.u32 %v109, 7
    %v111 = vstv %s108
    %v112 = vadd.s32 %v111, %v110
    %vm113 = vcmp.lt.s32.totalorder %v112, 8
    %v114 = vsel %vm113, %v107, 0.0
    %v115 = vrot.slane %v114, 4
    %v116 = vadd.f32 %v114, %v115
    %v117 = vrot.slane %v116, 2
    %v118 = vadd.f32 %v116, %v117
    %v119 = vrot.slane %v118, 1
    %v120 = vadd.f32 %v118, %v119
    %vm121 = vcmask 0
    %122 = vst.msk [vmem:[#allocation5] sm:$0x1] %vm121, %v120
    // Predicated region
    $region18: #{tpu_custom_call.1} parent=1 // pred_check
      _
    $region19: #{tpu_custom_call.1} parent=1 // pred_check_branch
      %124 = sbr.rel (0) target = $region21
    $region20: #{tpu_custom_call.1} parent=1 // pred_region
      %s126 = ssub.s32 16, 16
      %127 = vsyncadd [#allocation4], %s126
      %s129 = sshll.u32 [#allocation5], 4
      %s130 = int_to_ptr.vmem [resolvable:$true] %s129
      %132 = dma.vmem_to_hbm [thread:$0]  %s130, 16, %s3, [#allocation4]
    $region21: #{tpu_custom_call.1} parent=1 // pred_fallthru
      _
    // Predicated region
    $region22: #{tpu_custom_call.1} parent=1 // pred_check
      _
    $region23: #{tpu_custom_call.1} parent=1 // pred_check_branch
      %134 = sbr.rel (0) target = $region25
    $region24: #{tpu_custom_call.1} parent=1 // pred_region
      %135 = dma.done [#allocation4], 16
    $region25: #{tpu_custom_call.1} parent=1 // pred_fallthru
      _
    %136 = vsyncpa [#allocation3], 1
    %137 = vsyncpa [#allocation4], 1

</llo_original>
